<compile_context>
chip_gen: v7x
topology: tpu7x:2x2x1
jax: 0.10.0
libtpu: 0.0.40
codegen_flags: <defaults>
</compile_context>

<pallas_src>
import functools

import jax
import jax.numpy as jnp
from jax.experimental import pallas as pl
from jax.experimental.pallas import tpu as pltpu  # noqa: F401  (TPU backend)


def _fused_kernel(x_ref, ew_ref, eb_ref, pw_ref, pb_ref, g_ref, be_ref, o_ref,
                  *, inv_m, eps):
    """Single grid point: whole problem resident in VMEM for one invocation."""
    x = x_ref[...]                                            # (B, M*Fmax)
    # fused per-modality encoders: block-diagonal Linear + ReLU
    h = jnp.dot(x, ew_ref[...], preferred_element_type=jnp.float32)
    h = jnp.maximum(h + eb_ref[...], 0.0)                     # (B, M*H)
    # fused per-modality projections + sum over modalities in one matmul
    s = jnp.dot(h, pw_ref[...], preferred_element_type=jnp.float32)
    fused = (s + pb_ref[...]) * inv_m                         # mean over M
    # LayerNorm (f32, biased variance, eps=1e-5) + affine
    mu = jnp.mean(fused, axis=-1, keepdims=True)
    var = jnp.mean((fused - mu) ** 2, axis=-1, keepdims=True)
    normed = (fused - mu) * jax.lax.rsqrt(var + eps)
    o_ref[...] = (normed * g_ref[...] + be_ref[...]).astype(o_ref.dtype)


def multimodal_forward(x_cat, enc_w_bd, enc_b_cat, proj_w_cat, proj_b_sum,
                       gamma, beta, *, n_mod, eps=1e-5,
                       compute_dtype=jnp.float32):
    """x_cat: (B, M*Fmax); enc_w_bd: (M*Fmax, M*H) block-diagonal;
       enc_b_cat: (1, M*H); proj_w_cat: (M*H, P); proj_b_sum: (1, P);
       gamma/beta: (1, P).  Returns (B, P) float32.

       compute_dtype=jnp.bfloat16 halves MXU work / operand DMA on v6e/v7x
       (accumulation stays f32; LayerNorm stays f32)."""
    B = x_cat.shape[0]
    P = proj_w_cat.shape[-1]
    if compute_dtype != jnp.float32:
        x_cat = x_cat.astype(compute_dtype)
        enc_w_bd = enc_w_bd.astype(compute_dtype)
        proj_w_cat = proj_w_cat.astype(compute_dtype)

    kernel = functools.partial(_fused_kernel, inv_m=1.0 / n_mod, eps=eps)
    # No grid: B=8 rows is a single tile of work; everything fits trivially in
    # VMEM on v5e/v6e/v7x.  For very large B, add a "parallel" batch grid axis
    # (tiled (128, *) blocks) to shard across v7x's two TensorCores.
    return pl.pallas_call(
        kernel,
        out_shape=jax.ShapeDtypeStruct((B, P), jnp.float32),
    )(x_cat, enc_w_bd, enc_b_cat, proj_w_cat, proj_b_sum, gamma, beta)


def pack_params(inputs, params, modalities, in_feature_dict, H, P):
    """Host-side packing: concat inputs along features, build block-diagonal
    encoder weight, concat projection weights along rows, pre-sum proj biases."""
    M = len(modalities)
    Fmax = max(in_feature_dict.values())

    x_cat = jnp.concatenate(
        [jnp.pad(inputs[n], ((0, 0), (0, Fmax - in_feature_dict[n])))
         for n in modalities], axis=1)                         # (B, M*Fmax)

    blocks = []
    for i, n in enumerate(modalities):
        w = params["enc"][n][0]                                # (F_m, H)
        w = jnp.pad(w, ((0, Fmax - w.shape[0]), (0, 0)))       # zero pad rows
        blk = jnp.zeros((Fmax, M * H), jnp.float32).at[:, i * H:(i + 1) * H].set(w)
        blocks.append(blk)
    enc_w_bd = jnp.concatenate(blocks, axis=0)                 # (M*Fmax, M*H)

    enc_b_cat = jnp.concatenate(
        [params["enc"][n][1] for n in modalities])[None, :]    # (1, M*H)
    proj_w_cat = jnp.concatenate(
        [params["proj"][n][0] for n in modalities], axis=0)    # (M*H, P)
    proj_b_sum = sum(params["proj"][n][1] for n in modalities)[None, :]  # (1, P)

    gamma = params["gamma"][None, :]                           # (1, P)
    beta = params["beta"][None, :]                             # (1, P)
    return x_cat, enc_w_bd, enc_b_cat, proj_w_cat, proj_b_sum, gamma, beta


def reference_forward(inputs, params, eps=1e-5):
    """Pure-JAX reference of MultimodalModel.forward (projection fusion)."""
    projected = []
    for name in params["order"]:
        x = inputs[name]
        w, b = params["enc"][name]
        h = jax.nn.relu(x @ w + b)
        pw, pb = params["proj"][name]
        projected.append(h @ pw + pb)
    fused = jnp.stack(projected, axis=1).mean(axis=1)
    mu = fused.mean(-1, keepdims=True)
    var = ((fused - mu) ** 2).mean(-1, keepdims=True)
    return (fused - mu) / jnp.sqrt(var + eps) * params["gamma"] + params["beta"]


if __name__ == "__main__":
    key = jax.random.PRNGKey(0)

    # Small, module-consistent shapes.
    in_feature_dict = {"mAmbience": 16, "mBle": 24, "mGps": 12, "mWifi": 20}
    B = 8            # batch
    H = 32           # out_feature of each encoder
    P = 32           # proj_dim
    modalities = list(in_feature_dict.keys())
    M = len(modalities)          # M*H = 128 -> one full f32 vreg per row group

    # Deterministic parameter init.
    params = {"order": modalities, "enc": {}, "proj": {}}
    inputs = {}
    for name in modalities:
        F = in_feature_dict[name]
        key, k1, k2, k3, k4, k5 = jax.random.split(key, 6)
        inputs[name] = jax.random.normal(k1, (B, F), jnp.float32)
        params["enc"][name] = (
            jax.random.normal(k2, (F, H), jnp.float32) * 0.1,
            jax.random.normal(k3, (H,), jnp.float32) * 0.1,
        )
        params["proj"][name] = (
            jax.random.normal(k4, (H, P), jnp.float32) * 0.1,
            jax.random.normal(k5, (P,), jnp.float32) * 0.1,
        )
    key, kg, kb = jax.random.split(key, 3)
    params["gamma"] = jax.random.normal(kg, (P,), jnp.float32) * 0.1 + 1.0
    params["beta"] = jax.random.normal(kb, (P,), jnp.float32) * 0.1

    packed = pack_params(inputs, params, modalities, in_feature_dict, H, P)

    out = multimodal_forward(*packed, n_mod=M)
    out = jax.block_until_ready(out)

    ref = reference_forward(inputs, params)
    assert out.shape == (B, P)
    assert jnp.allclose(out, ref, atol=1e-4, rtol=1e-4), (
        f"max abs err {jnp.max(jnp.abs(out - ref))}")
    print("KERNEL_OK")
</pallas_src>

<mosaic_0001>
module attributes {stable_mosaic.version = 11 : i64} {
  func.func @_fused_kernel(%arg0: memref<8x96xf32, #tpu.memory_space<vmem>>, %arg1: memref<96x128xf32, #tpu.memory_space<vmem>>, %arg2: memref<1x128xf32, #tpu.memory_space<vmem>>, %arg3: memref<128x32xf32, #tpu.memory_space<vmem>>, %arg4: memref<1x32xf32, #tpu.memory_space<vmem>>, %arg5: memref<1x32xf32, #tpu.memory_space<vmem>>, %arg6: memref<1x32xf32, #tpu.memory_space<vmem>>, %arg7: memref<8x32xf32, #tpu.memory_space<vmem>>) attributes {dimension_semantics = [], scalar_prefetch = 0 : i64, scratch_operands = 0 : i64, tpu.core_type = #tpu.core_type<tc>} {
    %c0 = arith.constant 0 : index
    %c0_0 = arith.constant 0 : index
    %0 = vector.load %arg0[%c0, %c0_0] : memref<8x96xf32, #tpu.memory_space<vmem>>, vector<8x96xf32>
    %c0_1 = arith.constant 0 : index
    %c0_2 = arith.constant 0 : index
    %1 = vector.load %arg1[%c0_1, %c0_2] : memref<96x128xf32, #tpu.memory_space<vmem>>, vector<96x128xf32>
    %cst = arith.constant dense<0.000000e+00> : vector<8x128xf32>
    %2 = tpu.matmul %0, %1, %cst {dimension_numbers = #tpu.dot_dimension_numbers<[1], [0], [0], [1], [0, 0, 1, 1], [], []>} : vector<8x96xf32>, vector<96x128xf32>, vector<8x128xf32> -> vector<8x128xf32>
    %c0_3 = arith.constant 0 : index
    %c0_4 = arith.constant 0 : index
    %3 = vector.load %arg2[%c0_3, %c0_4] : memref<1x128xf32, #tpu.memory_space<vmem>>, vector<1x128xf32>
    %4 = vector.broadcast %3 : vector<1x128xf32> to vector<8x128xf32>
    %5 = arith.addf %2, %4 : vector<8x128xf32>
    %cst_5 = arith.constant 0.000000e+00 : f32
    %6 = vector.broadcast %cst_5 : f32 to vector<8x128xf32>
    %7 = arith.maximumf %5, %6 : vector<8x128xf32>
    %c0_6 = arith.constant 0 : index
    %c0_7 = arith.constant 0 : index
    %8 = vector.load %arg3[%c0_6, %c0_7] : memref<128x32xf32, #tpu.memory_space<vmem>>, vector<128x32xf32>
    %cst_8 = arith.constant dense<0.000000e+00> : vector<8x32xf32>
    %9 = tpu.matmul %7, %8, %cst_8 {dimension_numbers = #tpu.dot_dimension_numbers<[1], [0], [0], [1], [0, 0, 1, 1], [], []>} : vector<8x128xf32>, vector<128x32xf32>, vector<8x32xf32> -> vector<8x32xf32>
    %c0_9 = arith.constant 0 : index
    %c0_10 = arith.constant 0 : index
    %10 = vector.load %arg4[%c0_9, %c0_10] : memref<1x32xf32, #tpu.memory_space<vmem>>, vector<1x32xf32>
    %11 = vector.broadcast %10 : vector<1x32xf32> to vector<8x32xf32>
    %12 = arith.addf %9, %11 : vector<8x32xf32>
    %cst_11 = arith.constant 2.500000e-01 : f32
    %13 = vector.broadcast %cst_11 : f32 to vector<8x32xf32>
    %14 = arith.mulf %12, %13 : vector<8x32xf32>
    %cst_12 = arith.constant dense<0.000000e+00> : vector<8xf32>
    %15 = vector.multi_reduction <add>, %14, %cst_12 [1] : vector<8x32xf32> to vector<8xf32>
    %16 = vector.shape_cast %15 : vector<8xf32> to vector<8x1xf32>
    %cst_13 = arith.constant 3.200000e+01 : f32
    %17 = vector.broadcast %cst_13 : f32 to vector<8x1xf32>
    %18 = arith.divf %16, %17 : vector<8x1xf32>
    %19 = vector.broadcast %18 : vector<8x1xf32> to vector<8x32xf32>
    %20 = arith.subf %14, %19 : vector<8x32xf32>
    %21 = arith.mulf %20, %20 : vector<8x32xf32>
    %cst_14 = arith.constant dense<0.000000e+00> : vector<8xf32>
    %22 = vector.multi_reduction <add>, %21, %cst_14 [1] : vector<8x32xf32> to vector<8xf32>
    %23 = vector.shape_cast %22 : vector<8xf32> to vector<8x1xf32>
    %cst_15 = arith.constant 3.200000e+01 : f32
    %24 = vector.broadcast %cst_15 : f32 to vector<8x1xf32>
    %25 = arith.divf %23, %24 : vector<8x1xf32>
    %26 = vector.broadcast %18 : vector<8x1xf32> to vector<8x32xf32>
    %27 = arith.subf %14, %26 : vector<8x32xf32>
    %cst_16 = arith.constant 9.99999974E-6 : f32
    %28 = vector.broadcast %cst_16 : f32 to vector<8x1xf32>
    %29 = arith.addf %25, %28 : vector<8x1xf32>
    %30 = math.rsqrt %29 : vector<8x1xf32>
    %31 = vector.broadcast %30 : vector<8x1xf32> to vector<8x32xf32>
    %32 = arith.mulf %27, %31 : vector<8x32xf32>
    %c0_17 = arith.constant 0 : index
    %c0_18 = arith.constant 0 : index
    %33 = vector.load %arg5[%c0_17, %c0_18] : memref<1x32xf32, #tpu.memory_space<vmem>>, vector<1x32xf32>
    %34 = vector.broadcast %33 : vector<1x32xf32> to vector<8x32xf32>
    %35 = arith.mulf %32, %34 : vector<8x32xf32>
    %c0_19 = arith.constant 0 : index
    %c0_20 = arith.constant 0 : index
    %36 = vector.load %arg6[%c0_19, %c0_20] : memref<1x32xf32, #tpu.memory_space<vmem>>, vector<1x32xf32>
    %37 = vector.broadcast %36 : vector<1x32xf32> to vector<8x32xf32>
    %38 = arith.addf %35, %37 : vector<8x32xf32>
    %c0_21 = arith.constant 0 : index
    %c0_22 = arith.constant 0 : index
    %39 = vector.load %arg7[%c0_21, %c0_22] : memref<8x32xf32, #tpu.memory_space<vmem>>, vector<8x32xf32>
    tpu.vector_store %arg7[%c0_21, %c0_22], %38 {strides = array<i32>} : memref<8x32xf32, #tpu.memory_space<vmem>>, vector<8x32xf32>,
    return
  }
}

</mosaic_0001>

<llo_original>
// kernel: tpu_custom_call.1
$region0: #{tpu_custom_call.1}
  #allocation0 [shape = 'u32[]', space=smem, size = 0x4, offset = 0x4, fixed_abs, tag = 'smem constant byte address 0x4 - core index']
  #allocation1 [shape = 'u32[144,128]{1,0:T(1,128)}', space=vmem, size = 0x12000, scoped, tag = 'internal scratch']
  %s0 = inlined_call_operand.vmem [shape: f32[8,96], index: 0, kind: input, shape index: {}]
  %s1 = inlined_call_operand.vmem [shape: f32[96,128], index: 1, kind: input, shape index: {}]
  %s2 = inlined_call_operand.vmem [shape: f32[1,128], index: 2, kind: input, shape index: {}]
  %s3 = inlined_call_operand.vmem [shape: f32[128,32], index: 3, kind: input, shape index: {}]
  %s4 = inlined_call_operand.vmem [shape: f32[1,32], index: 4, kind: input, shape index: {}]
  %s5 = inlined_call_operand.vmem [shape: f32[1,32], index: 5, kind: input, shape index: {}]
  %s6 = inlined_call_operand.vmem [shape: f32[1,32], index: 6, kind: input, shape index: {}]
  %s7 = inlined_call_operand.hbm [shape: f32[8,32], index: 7, kind: output, shape index: {}]
  %s8 = sld [smem:[#allocation0]]
  $region38: #{tpu_custom_call.1} parent=0
    _
  %s10 = ssub.s32 1, %s8
  %s11 = scalar_select 0, %s10, %s8
  $region1: #{tpu_custom_call.1} parent=0
    #allocation2 [shape = 'u8[4096]{0}', space=vmem, size = 0x1000, scoped, tag = 'output window, operand 0, single buffered']
    #allocation3 [shape = 's32[1]{0}', space=sflag, size = 0x4, scoped, tag = 'scoped memory for tpu_custom_call.1']
    %12 = vsyncpa [#allocation3], 0
    // Predicated region
    $region2: #{tpu_custom_call.1} parent=1 // pred_check
      _
    $region3: #{tpu_custom_call.1} parent=1 // pred_check_branch
      %14 = sbr.rel (0) target = $region5
    $region4: #{tpu_custom_call.1} parent=1 // pred_region
      _
    $region5: #{tpu_custom_call.1} parent=1 // pred_fallthru
      _
    // Predicated region
    $region6: #{tpu_custom_call.1} parent=1 // pred_check
      _
    $region7: #{tpu_custom_call.1} parent=1 // pred_check_branch
      %16 = sbr.rel (0) target = $region9
    $region8: #{tpu_custom_call.1} parent=1 // pred_region
      _
    $region9: #{tpu_custom_call.1} parent=1 // pred_fallthru
      _
    // Predicated region
    $region10: #{tpu_custom_call.1} parent=1 // pred_check
      _
    $region11: #{tpu_custom_call.1} parent=1 // pred_check_branch
      %18 = sbr.rel (0) target = $region13
    $region12: #{tpu_custom_call.1} parent=1 // pred_region
      _
    $region13: #{tpu_custom_call.1} parent=1 // pred_fallthru
      _
    // Predicated region
    $region14: #{tpu_custom_call.1} parent=1 // pred_check
      _
    $region15: #{tpu_custom_call.1} parent=1 // pred_check_branch
      %20 = sbr.rel (0) target = $region17
    $region16: #{tpu_custom_call.1} parent=1 // pred_region
      _
    $region17: #{tpu_custom_call.1} parent=1 // pred_fallthru
      _
    // Predicated region
    $region18: #{tpu_custom_call.1} parent=1 // pred_check
      _
    $region19: #{tpu_custom_call.1} parent=1 // pred_check_branch
      %22 = sbr.rel (0) target = $region21
    $region20: #{tpu_custom_call.1} parent=1 // pred_region
      _
    $region21: #{tpu_custom_call.1} parent=1 // pred_fallthru
      _
    // Predicated region
    $region22: #{tpu_custom_call.1} parent=1 // pred_check
      _
    $region23: #{tpu_custom_call.1} parent=1 // pred_check_branch
      %24 = sbr.rel (0) target = $region25
    $region24: #{tpu_custom_call.1} parent=1 // pred_region
      _
    $region25: #{tpu_custom_call.1} parent=1 // pred_fallthru
      _
    // Predicated region
    $region26: #{tpu_custom_call.1} parent=1 // pred_check
      _
    $region27: #{tpu_custom_call.1} parent=1 // pred_check_branch
      %26 = sbr.rel (0) target = $region29
    $region28: #{tpu_custom_call.1} parent=1 // pred_region
      _
    $region29: #{tpu_custom_call.1} parent=1 // pred_fallthru
      _
    %v27 = vld [vmem:[%s0] sm:$0xff]
    %v28 = vld [vmem:[%s1] sm:$0xff]
    %v29 = vld [vmem:[%s1 + $0x8] sm:$0xff]
    %v30 = vld [vmem:[%s1 + $0x10] sm:$0xff]
    %v31 = vld [vmem:[%s1 + $0x18] sm:$0xff]
    %v32 = vld [vmem:[%s1 + $0x20] sm:$0xff]
    %v33 = vld [vmem:[%s1 + $0x28] sm:$0xff]
    %v34 = vld [vmem:[%s1 + $0x30] sm:$0xff]
    %v35 = vld [vmem:[%s1 + $0x38] sm:$0xff]
    %v36 = vld [vmem:[%s1 + $0x40] sm:$0xff]
    %v37 = vld [vmem:[%s1 + $0x48] sm:$0xff]
    %v38 = vld [vmem:[%s1 + $0x50] sm:$0xff]
    %v39 = vld [vmem:[%s1 + $0x58] sm:$0xff]
    %v40 = vld [vmem:[%s2] sm:$0x1]
    %v42 = vlaneseq
    %v43 = vshrl.u32 %v42, 7
    %v44 = vsub.s32 0, %v43
    %v45 = vrot.slane %v40, %v44
    %vm47 = vcmask 785408
    %v49 = vsel %vm47, %v27, 0
    %51 = vmatprep.subr.mxu0 0.0
    %52 = vmatpush1.msra.mxu0 %v28
    %53 = vmatprep.subr.mxu0 0.0
    %54 = vmatpush1.msra.mxu0 %v29
    %55 = vmatprep.subr.mxu0 0.0
    %56 = vmatpush1.msra.mxu0 %v30
    %57 = vmatprep.subr.mxu0 0.0
    %58 = vmatpush1.msra.mxu0 %v31
    %59 = vmatprep.subr.mxu0 0.0
    %60 = vmatpush1.msra.mxu0 %v32
    %61 = vmatprep.subr.mxu0 0.0
    %62 = vmatpush1.msra.mxu0 %v33
    %63 = vmatprep.subr.mxu0 0.0
    %64 = vmatpush1.msra.mxu0 %v34
    %65 = vmatprep.subr.mxu0 0.0
    %66 = vmatpush1.msra.mxu0 %v35
    %67 = vmatprep.subr.mxu0 0.0
    %68 = vmatpush1.msra.mxu0 %v36
    %69 = vmatprep.subr.mxu0 0.0
    %70 = vmatpush1.msra.mxu0 %v37
    %71 = vmatprep.subr.mxu0 0.0
    %72 = vmatpush1.msra.mxu0 %v38
    %73 = vmatprep.subr.mxu0 0.0
    %74 = vmatpush1.msra.mxu0 %v39
    %75 = vmatprep.subr.mxu0 0.0
    %76 = vmatpush1.msra.mxu0 0.0
    %77 = vmatprep.subr.mxu0 0.0
    %78 = vmatpush1.msra.mxu0 0.0
    %79 = vmatprep.subr.mxu0 0.0
    %80 = vmatpush1.msra.mxu0 0.0
    %81 = vmatprep.subr.mxu0 0.0
    %82 = vmatpush1.msra.mxu0 0.0
    %83 = vmatprep.subr.mxu0 0.0
    %84 = vmatpush1.msra.mxu0 0.0
    %85 = vmatprep.subr.mxu0 0.0
    %86 = vmatpush1.msra.mxu0 0.0
    %87 = vmatprep.subr.mxu0 0.0
    %88 = vmatpush1.msra.mxu0 0.0
    %89 = vmatprep.subr.mxu0 0.0
    %90 = vmatpush1.msra.mxu0 0.0
    %91 = vmatprep.subr.mxu0 0.0
    %92 = vmatpush1.msra.mxu0 0.0
    %93 = vmatprep.subr.mxu0 0.0
    %94 = vmatpush1.msra.mxu0 0.0
    %95 = vmatprep.subr.mxu0 0.0
    %96 = vmatpush1.msra.mxu0 0.0
    %97 = vmatprep.subr.mxu0 0.0
    %98 = vmatpush1.msra.mxu0 0.0
    %99 = vmatprep.subr.mxu0 0.0
    %100 = vmatpush1.msra.mxu0 0.0
    %101 = vmatprep.subr.mxu0 0.0
    %102 = vmatpush1.msra.mxu0 0.0
    %103 = vmatprep.subr.mxu0 0.0
    %104 = vmatpush1.msra.mxu0 0.0
    %105 = vmatprep.subr.mxu0 0.0
    %106 = vmatpush1.msra.mxu0 0.0
    %107 = vmatprep.subr.mxu0 0.0
    %108 = vmatpush1.msra.mxu0 0.0
    %109 = vmatprep.subr.mxu0 0.0
    %110 = vmatpush1.msra.mxu0 0.0
    %111 = vmatprep.subr.mxu0 0.0
    %112 = vmatpush1.msra.mxu0 0.0
    %113 = vmatprep.subr.mxu0 0.0
    %114 = vmatpush1.msra.mxu0 0.0
    %115 = vmatprep.mubr.f32.mxu0 0.0
    %116 = vmatmul.mubr.f32.gmra.mrb[0].mxu0 %v49
    %v117 = vpop.f32.mrb[0].mxu0
    %v118 = vadd.f32 %v45, %v117
    %v119 = vpop.f32.mrb[0].mxu0
    %120 = vdwg.mxu0
    %v121 = vmax.f32 %v118, 0.0
    %v122 = vld [vmem:[%s3] sm:$0xff]
    %v123 = vld [vmem:[%s3 + $0x8] sm:$0xff]
    %v124 = vld [vmem:[%s3 + $0x10] sm:$0xff]
    %v125 = vld [vmem:[%s3 + $0x18] sm:$0xff]
    %v126 = vld [vmem:[%s3 + $0x20] sm:$0xff]
    %v127 = vld [vmem:[%s3 + $0x28] sm:$0xff]
    %v128 = vld [vmem:[%s3 + $0x30] sm:$0xff]
    %v129 = vld [vmem:[%s3 + $0x38] sm:$0xff]
    %v130 = vld [vmem:[%s3 + $0x40] sm:$0xff]
    %v131 = vld [vmem:[%s3 + $0x48] sm:$0xff]
    %v132 = vld [vmem:[%s3 + $0x50] sm:$0xff]
    %v133 = vld [vmem:[%s3 + $0x58] sm:$0xff]
    %v134 = vld [vmem:[%s3 + $0x60] sm:$0xff]
    %v135 = vld [vmem:[%s3 + $0x68] sm:$0xff]
    %v136 = vld [vmem:[%s3 + $0x70] sm:$0xff]
    %v137 = vld [vmem:[%s3 + $0x78] sm:$0xff]
    %v138 = vld [vmem:[%s4] sm:$0x1]
    %v140 = vlaneseq
    %v141 = vshrl.u32 %v140, 7
    %v142 = vsub.s32 0, %v141
    %v143 = vrot.slane %v138, %v142
    %145 = vmatprep.subr.mxu0 0.0
    %146 = vmatpush1.msra.mxu0 %v122
    %147 = vmatprep.subr.mxu0 0.0
    %148 = vmatpush1.msra.mxu0 %v123
    %149 = vmatprep.subr.mxu0 0.0
    %150 = vmatpush1.msra.mxu0 %v124
    %151 = vmatprep.subr.mxu0 0.0
    %152 = vmatpush1.msra.mxu0 %v125
    %153 = vmatprep.subr.mxu0 0.0
    %154 = vmatpush1.msra.mxu0 %v126
    %155 = vmatprep.subr.mxu0 0.0
    %156 = vmatpush1.msra.mxu0 %v127
    %157 = vmatprep.subr.mxu0 0.0
    %158 = vmatpush1.msra.mxu0 %v128
    %159 = vmatprep.subr.mxu0 0.0
    %160 = vmatpush1.msra.mxu0 %v129
    %161 = vmatprep.subr.mxu0 0.0
    %162 = vmatpush1.msra.mxu0 %v130
    %163 = vmatprep.subr.mxu0 0.0
    %164 = vmatpush1.msra.mxu0 %v131
    %165 = vmatprep.subr.mxu0 0.0
    %166 = vmatpush1.msra.mxu0 %v132
    %167 = vmatprep.subr.mxu0 0.0
    %168 = vmatpush1.msra.mxu0 %v133
    %169 = vmatprep.subr.mxu0 0.0
    %170 = vmatpush1.msra.mxu0 %v134
    %171 = vmatprep.subr.mxu0 0.0
    %172 = vmatpush1.msra.mxu0 %v135
    %173 = vmatprep.subr.mxu0 0.0
    %174 = vmatpush1.msra.mxu0 %v136
    %175 = vmatprep.subr.mxu0 0.0
    %176 = vmatpush1.msra.mxu0 %v137
    %177 = vmatprep.subr.mxu0 0.0
    %178 = vmatpush1.msra.mxu0 0.0
    %179 = vmatprep.subr.mxu0 0.0
    %180 = vmatpush1.msra.mxu0 0.0
    %181 = vmatprep.subr.mxu0 0.0
    %182 = vmatpush1.msra.mxu0 0.0
    %183 = vmatprep.subr.mxu0 0.0
    %184 = vmatpush1.msra.mxu0 0.0
    %185 = vmatprep.subr.mxu0 0.0
    %186 = vmatpush1.msra.mxu0 0.0
    %187 = vmatprep.subr.mxu0 0.0
    %188 = vmatpush1.msra.mxu0 0.0
    %189 = vmatprep.subr.mxu0 0.0
    %190 = vmatpush1.msra.mxu0 0.0
    %191 = vmatprep.subr.mxu0 0.0
    %192 = vmatpush1.msra.mxu0 0.0
    %193 = vmatprep.subr.mxu0 0.0
    %194 = vmatpush1.msra.mxu0 0.0
    %195 = vmatprep.subr.mxu0 0.0
    %196 = vmatpush1.msra.mxu0 0.0
    %197 = vmatprep.subr.mxu0 0.0
    %198 = vmatpush1.msra.mxu0 0.0
    %199 = vmatprep.subr.mxu0 0.0
    %200 = vmatpush1.msra.mxu0 0.0
    %201 = vmatprep.subr.mxu0 0.0
    %202 = vmatpush1.msra.mxu0 0.0
    %203 = vmatprep.subr.mxu0 0.0
    %204 = vmatpush1.msra.mxu0 0.0
    %205 = vmatprep.subr.mxu0 0.0
    %206 = vmatpush1.msra.mxu0 0.0
    %207 = vmatprep.subr.mxu0 0.0
    %208 = vmatpush1.msra.mxu0 0.0
    %209 = vmatprep.mubr.f32.mxu0 0.0
    %210 = vmatmul.mubr.f32.gmra.mrb[0].mxu0 %v121
    %v211 = vpop.f32.mrb[0].mxu0
    %v212 = vadd.f32 %v143, %v211
    %v213 = vpop.f32.mrb[0].mxu0
    %214 = vdwg.mxu0
    %v215 = vmul.f32 %v212, 0.25
    %vm216 = vcmask 261120
    %v217 = vsel %vm216, %v215, 0.0
    %218 = vadd.xlane.f32.xlu0 %v217
    %v219 = vpop.xlane.xlu0 %218
    %v220 = vrcp.pop 32.0
    %v221 = vmul.f32 %v219, %v220
    %v222 = vsub.f32 %v215, %v221
    %v223 = vmul.f32 %v222, %v222
    %v224 = vsel %vm216, %v223, 0.0
    %225 = vadd.xlane.f32.xlu0 %v224
    %v226 = vpop.xlane.xlu0 %225
    %v227 = vmul.f32 %v226, %v220
    %v228 = vadd.f32 %v227, 1e-05
    %v229 = vrsqrt.pop %v228
    %v230 = vmul.f32 %v222, %v229
    %v231 = vld [vmem:[%s5] sm:$0x1]
    %v233 = vlaneseq
    %v234 = vshrl.u32 %v233, 7
    %v235 = vsub.s32 0, %v234
    %v236 = vrot.slane %v231, %v235
    %v238 = vmul.f32 %v230, %v236
    %v239 = vld [vmem:[%s6] sm:$0x1]
    %v241 = vlaneseq
    %v242 = vshrl.u32 %v241, 7
    %v243 = vsub.s32 0, %v242
    %v244 = vrot.slane %v239, %v243
    %v246 = vadd.f32 %v238, %v244
    %247 = vst.msk [vmem:[#allocation2] sm:$0xff] %vm216, %v246
    // Predicated region
    $region30: #{tpu_custom_call.1} parent=1 // pred_check
      _
    $region31: #{tpu_custom_call.1} parent=1 // pred_check_branch
      %249 = sbr.rel (0) target = $region33
    $region32: #{tpu_custom_call.1} parent=1 // pred_region
      %s251 = ssub.s32 128, 128
      %252 = vsyncadd [#allocation3], %s251
      %s254 = sshll.u32 [#allocation2], 4
      %s255 = int_to_ptr.vmem [resolvable:$true] %s254
      %257 = dma.vmem_to_hbm [thread:$0]  %s255, 128, %s7, [#allocation3]
    $region33: #{tpu_custom_call.1} parent=1 // pred_fallthru
      _
    // Predicated region
    $region34: #{tpu_custom_call.1} parent=1 // pred_check
      _
    $region35: #{tpu_custom_call.1} parent=1 // pred_check_branch
      %259 = sbr.rel (0) target = $region37
    $region36: #{tpu_custom_call.1} parent=1 // pred_region
      %260 = dma.done [#allocation3], 128
    $region37: #{tpu_custom_call.1} parent=1 // pred_fallthru
      _
    %261 = vsyncpa [#allocation3], 1

</llo_original>
